<compile_context>
chip_gen: v6e
topology: v6e:2x2x1
jax: 0.10.0
libtpu: 0.0.40
codegen_flags: <defaults>
</compile_context>

<pallas_src>
import functools

import jax
import jax.numpy as jnp
from jax import lax
from jax.experimental import pallas as pl
from jax.experimental.pallas import tpu as pltpu


def _patch_nce_kernel(q_ref, k_ref, loss_ref, *, nce_T: float,
                      use_bf16_mxu: bool):
    # q_ref: (TB, TQ, D)   k_ref: (TB, P, D)   loss_ref: (TB, 1, TQ)
    inv_t = jnp.float32(1.0 / nce_T)
    neg_fill = jnp.float32(-10.0 / nce_T)

    _, tq, _ = q_ref.shape
    p = k_ref.shape[1]

    # Fold 1/T into q (O(TB*TQ*D)) instead of scaling the (TB,TQ,P) logits.
    q = q_ref[...].astype(jnp.float32) * inv_t                      # (TB,TQ,D)

    # Key tile feeds the MXU directly — no f32 round trip of the (TB,P,D) block.
    if use_bf16_mxu:
        a = q.astype(jnp.bfloat16)
        b = k_ref[...] if k_ref.dtype == jnp.bfloat16 \
            else k_ref[...].astype(jnp.bfloat16)
    else:
        a = q
        b = k_ref[...] if k_ref.dtype == jnp.float32 \
            else k_ref[...].astype(jnp.float32)

    # Batched scaled similarity S/T, contracting the feature dim of both
    # operands (same pattern as flash-attention q @ k^T); f32 accumulation.
    s = lax.dot_general(a, b,
                        dimension_numbers=(((2,), (2,)), ((0,), (0,))),
                        preferred_element_type=jnp.float32)         # (TB,TQ,P)

    # Positive logit <q_i, k_i>/T straight from the feature tiles (no eye mask).
    if tq == p:                               # whole-P query tile: q_start == 0
        k_diag = k_ref[...]
    else:
        q_start = pl.multiple_of(pl.program_id(1) * tq, tq)
        k_diag = k_ref[:, pl.ds(q_start, tq), :]
    pos_l = jnp.sum(q * k_diag.astype(jnp.float32),
                    axis=-1, keepdims=True)                         # (TB,TQ,1)

    # Cross-entropy with target 0 over logits [pos/T, S/T(diag -> -10/T)] via a
    # stable logsumexp.  The unmasked row-sum already contains exp(S_ii/T - m)
    # == exp(pos/T - m) (the positive column of the torch `cat`); the only
    # correction is adding the exp(-10/T - m) diagonal-fill term (m clamped to
    # >= -10/T so it never overflows).
    m = jnp.maximum(jnp.max(s, axis=-1, keepdims=True), neg_fill)   # (TB,TQ,1)
    sum_exp = (jnp.sum(jnp.exp(s - m), axis=-1, keepdims=True)
               + jnp.exp(neg_fill - m))                             # (TB,TQ,1)
    loss = m + jnp.log(sum_exp) - pos_l                             # (TB,TQ,1)

    loss_ref[:, 0, :] = loss[:, :, 0].astype(loss_ref.dtype)


def _vmem_limit_bytes():
    """Per-generation working VMEM limit handed to the Mosaic compiler.

    ~90 MiB on 128 MiB parts (v5e/v6e), ~45 MiB on 64 MiB-per-core parts (v7x).
    """
    try:
        cap = int(pltpu.get_tpu_info().vmem_capacity_bytes)
    except Exception:                       # no TPU at trace time / older jax
        cap = 64 * 1024 * 1024
    return min(int(cap * 0.70), 96 * 1024 * 1024)


def _step_vmem_bytes(tb, tq, P, D, itemsize, kbuf, use_bf16_mxu):
    """Conservative per-grid-step VMEM footprint of this kernel."""
    q_in = 2 * tb * tq * D * itemsize         # pipelined q block (double buffer)
    k_in = kbuf * tb * P * D * itemsize       # key block (1 buf if grid-invariant)
    o_out = 2 * tb * tq * 4                   # pipelined output block
    sim = 2 * tb * tq * P * 4                 # s and exp(s - m) f32 temporaries
    q_cpy = tb * tq * D * 4                   # scaled f32 copy of q
    kd = tb * tq * D * 4                      # f32 diag slice for pos_l
    if use_bf16_mxu:
        k_cpy = 0 if itemsize == 2 else tb * P * D * 2
    else:
        k_cpy = 0 if itemsize == 4 else tb * P * D * 4
    return q_in + k_in + o_out + sim + q_cpy + kd + k_cpy


def _choose_tiles(B, P, D, itemsize, budget, use_bf16_mxu):
    """Pick (TB, TQ): batch entries per step and query rows per step."""
    kbuf = 1 if B == 1 else 2                 # key single-buffered iff invariant

    def fits(tb, tq):
        return _step_vmem_bytes(tb, tq, P, D, itemsize, kbuf,
                                use_bf16_mxu) <= budget

    if fits(1, P):
        # Small/medium P: whole-key, whole-query-per-batch-entry steps.  Keep
        # >= 2 grid steps so step i+1's DMA overlaps step i's compute and
        # v7x's second TensorCore has work.
        if B > 1:
            tb = 1
            for cand in range(min(B // 2, 64), 0, -1):   # cap => >= 2 bi steps
                if B % cand == 0 and fits(cand, P):
                    tb = cand
                    break
            return tb, P
        # B == 1: split the query axis in two (when alignment allows) purely
        # for pipelining / second-core occupancy.
        if P % 256 == 0 and fits(1, P // 2):
            return 1, P // 2
        return 1, P

    # Large-P path (typically the all-negatives B == 1 case): tile the query
    # axis; the key block stays resident across query tiles.
    if P % 128 == 0:
        for tq in range(P - 128, 0, -128):    # lane-dense output: TQ % 128 == 0
            if P % tq == 0 and fits(1, tq):
                return 1, tq
    # TODO(synk): key-axis tiling with an online logsumexp for this regime.
    return 1, P


def patch_nce_loss(feat_q, feat_k, *, batch_size: int,
                   nce_includes_all_negatives_from_minibatch: bool = False,
                   nce_T: float = 0.07,
                   use_bf16_mxu=None):
    """Forward pass of PatchNCELoss. Returns per-patch loss, shape (num_patches,)."""
    num_patches, dim = feat_q.shape
    feat_k = lax.stop_gradient(feat_k)              # feat_k.detach()

    B = 1 if nce_includes_all_negatives_from_minibatch else batch_size
    if num_patches % B != 0:
        raise ValueError(
            f"num_patches={num_patches} must be divisible by batch dim {B}")
    q = feat_q.reshape(B, -1, dim)                  # (B, P, D)
    k = feat_k.reshape(B, -1, dim)                  # (B, P, D)
    _, P, D = q.shape

    if use_bf16_mxu is None:
        # Auto: bf16 inputs take the native bf16 MXU path (v6e/v7x fast path);
        # f32 inputs stay f32 so per-patch loss holds <=1e-3 tolerance at T=0.07.
        use_bf16_mxu = (feat_q.dtype == jnp.bfloat16
                        or feat_k.dtype == jnp.bfloat16)

    itemsize = max(jnp.dtype(feat_q.dtype).itemsize,
                   jnp.dtype(feat_k.dtype).itemsize)
    vmem_limit = _vmem_limit_bytes()
    budget = int(vmem_limit * 0.85)                 # headroom for compiler scratch
    TB, TQ = _choose_tiles(B, P, D, itemsize, budget, use_bf16_mxu)
    key_grid_invariant = (B // TB) == 1

    kernel = functools.partial(_patch_nce_kernel, nce_T=float(nce_T),
                               use_bf16_mxu=use_bf16_mxu)
    cost = pl.CostEstimate(
        flops=2 * B * P * P * D + 2 * B * P * D,
        transcendentals=B * P * (P + 2),
        bytes_accessed=int(q.size + k.size) * itemsize + B * P * 4)

    def build(single_buffer_key):
        k_spec_kwargs = {}
        if single_buffer_key:
            # Key block index is constant across the grid: one buffer suffices,
            # freeing P*D*itemsize of VMEM for a larger query tile.
            k_spec_kwargs["pipeline_mode"] = pl.Buffered(1)
        return pl.pallas_call(
            kernel,
            out_shape=jax.ShapeDtypeStruct((B, 1, P), jnp.float32),
            grid_spec=pltpu.PrefetchScalarGridSpec(
                num_scalar_prefetch=0,
                grid=(B // TB, P // TQ),
                in_specs=[
                    pl.BlockSpec((TB, TQ, D), lambda bi, qi: (bi, qi, 0)),
                    pl.BlockSpec((TB, P, D), lambda bi, qi: (bi, 0, 0),
                                 **k_spec_kwargs),
                ],
                out_specs=pl.BlockSpec((TB, 1, TQ), lambda bi, qi: (bi, 0, qi)),
            ),
            compiler_params=pltpu.CompilerParams(
                dimension_semantics=("parallel", "parallel"),
                vmem_limit_bytes=vmem_limit),
            cost_estimate=cost,
        )

    if key_grid_invariant:
        try:
            loss = build(True)(q, k)
        except Exception:
            # pipeline_mode=pl.Buffered(1) not supported on this jax version:
            # fall back to the default double-buffered key.
            loss = build(False)(q, k)
    else:
        loss = build(False)(q, k)

    return loss.reshape(-1)                         # (num_patches,)


def _reference(feat_q, feat_k, *, batch_size, include_all, nce_T):
    """Pure-JAX reference mirroring the PyTorch module."""
    num_patches, dim = feat_q.shape
    l_pos = jnp.sum(feat_q * feat_k, axis=1, keepdims=True)        # (N, 1)
    B = 1 if include_all else batch_size
    q = feat_q.reshape(B, -1, dim)
    k = feat_k.reshape(B, -1, dim)
    P = q.shape[1]
    l_neg = jnp.einsum('bpd,bqd->bpq', q, k)
    eye = jnp.eye(P, dtype=bool)[None]
    l_neg = jnp.where(eye, -10.0, l_neg).reshape(-1, P)
    out = jnp.concatenate([l_pos, l_neg], axis=1) / nce_T
    lse = jax.nn.logsumexp(out, axis=1)
    return lse - out[:, 0]


if __name__ == "__main__":
    key = jax.random.PRNGKey(0)
    batch_size = 2
    patches_per_image = 8
    num_patches = batch_size * patches_per_image    # 16
    dim = 32
    nce_T = 0.07

    kq, kk = jax.random.split(key)
    feat_q = jax.random.normal(kq, (num_patches, dim), dtype=jnp.float32)
    feat_k = jax.random.normal(kk, (num_patches, dim), dtype=jnp.float32)

    # Per-batch negatives path.
    loss = patch_nce_loss(feat_q, feat_k, batch_size=batch_size,
                          nce_includes_all_negatives_from_minibatch=False,
                          nce_T=nce_T)
    loss = jax.block_until_ready(loss)
    ref = _reference(feat_q, feat_k, batch_size=batch_size,
                     include_all=False, nce_T=nce_T)
    assert loss.shape == (num_patches,)
    assert jnp.allclose(loss, ref, rtol=1e-3, atol=1e-3)

    # All-negatives-from-minibatch path (B = 1).
    loss_all = patch_nce_loss(feat_q, feat_k, batch_size=batch_size,
                              nce_includes_all_negatives_from_minibatch=True,
                              nce_T=nce_T)
    loss_all = jax.block_until_ready(loss_all)
    ref_all = _reference(feat_q, feat_k, batch_size=batch_size,
                         include_all=True, nce_T=nce_T)
    assert loss_all.shape == (num_patches,)
    assert jnp.allclose(loss_all, ref_all, rtol=1e-3, atol=1e-3)

    print("KERNEL_OK")
</pallas_src>

<mosaic_0001>
module attributes {stable_mosaic.version = 11 : i64} {
  func.func @_patch_nce_kernel(%arg0: i32, %arg1: i32, %arg2: memref<1x8x32xf32, #tpu.memory_space<vmem>>, %arg3: memref<1x8x32xf32, #tpu.memory_space<vmem>>, %arg4: memref<1x1x8xf32, #tpu.memory_space<vmem>>) attributes {dimension_semantics = [#tpu.dimension_semantics<parallel>, #tpu.dimension_semantics<parallel>], iteration_bounds = array<i64: 2, 1>, scalar_prefetch = 0 : i64, scratch_operands = 0 : i64, tpu.core_type = #tpu.core_type<tc>, window_params = [{transform_indices = @transform_0, window_bounds = array<i64: 1, 8, 32>}, {transform_indices = @transform_1, window_bounds = array<i64: 1, 8, 32>}, {transform_indices = @transform_2, window_bounds = array<i64: 1, 1, 8>}]} {
    %c0 = arith.constant 0 : index
    %c0_0 = arith.constant 0 : index
    %c0_1 = arith.constant 0 : index
    %0 = vector.load %arg2[%c0, %c0_0, %c0_1] : memref<1x8x32xf32, #tpu.memory_space<vmem>>, vector<1x8x32xf32>
    %cst = arith.constant 14.2857141 : f32
    %1 = vector.broadcast %cst : f32 to vector<1x8x32xf32>
    %2 = arith.mulf %0, %1 : vector<1x8x32xf32>
    %c0_2 = arith.constant 0 : index
    %c0_3 = arith.constant 0 : index
    %c0_4 = arith.constant 0 : index
    %3 = vector.load %arg3[%c0_2, %c0_3, %c0_4] : memref<1x8x32xf32, #tpu.memory_space<vmem>>, vector<1x8x32xf32>
    %cst_5 = arith.constant dense<0.000000e+00> : vector<1x8x8xf32>
    %4 = tpu.matmul %2, %3, %cst_5 {dimension_numbers = #tpu.dot_dimension_numbers<[2], [2], [1], [1], [0, 0, 0, 1, 1, 1], [0], [0]>} : vector<1x8x32xf32>, vector<1x8x32xf32>, vector<1x8x8xf32> -> vector<1x8x8xf32>
    %c0_6 = arith.constant 0 : index
    %c0_7 = arith.constant 0 : index
    %c0_8 = arith.constant 0 : index
    %5 = vector.load %arg3[%c0_6, %c0_7, %c0_8] : memref<1x8x32xf32, #tpu.memory_space<vmem>>, vector<1x8x32xf32>
    %6 = arith.mulf %2, %5 : vector<1x8x32xf32>
    %cst_9 = arith.constant dense<0.000000e+00> : vector<1x8xf32>
    %7 = vector.multi_reduction <add>, %6, %cst_9 [2] : vector<1x8x32xf32> to vector<1x8xf32>
    %8 = vector.shape_cast %7 : vector<1x8xf32> to vector<1x8x1xf32>
    %cst_10 = arith.constant dense<0xFF800000> : vector<1x8xf32>
    %9 = vector.multi_reduction <maximumf>, %4, %cst_10 [2] : vector<1x8x8xf32> to vector<1x8xf32>
    %10 = vector.shape_cast %9 : vector<1x8xf32> to vector<1x8x1xf32>
    %cst_11 = arith.constant -142.857147 : f32
    %11 = vector.broadcast %cst_11 : f32 to vector<1x8x1xf32>
    %12 = arith.maximumf %10, %11 : vector<1x8x1xf32>
    %13 = vector.broadcast %12 : vector<1x8x1xf32> to vector<1x8x8xf32>
    %14 = arith.subf %4, %13 : vector<1x8x8xf32>
    %15 = math.exp %14 : vector<1x8x8xf32>
    %cst_12 = arith.constant dense<0.000000e+00> : vector<1x8xf32>
    %16 = vector.multi_reduction <add>, %15, %cst_12 [2] : vector<1x8x8xf32> to vector<1x8xf32>
    %17 = vector.shape_cast %16 : vector<1x8xf32> to vector<1x8x1xf32>
    %cst_13 = arith.constant -142.857147 : f32
    %18 = vector.broadcast %cst_13 : f32 to vector<1x8x1xf32>
    %19 = arith.subf %18, %12 : vector<1x8x1xf32>
    %20 = math.exp %19 : vector<1x8x1xf32>
    %21 = arith.addf %17, %20 : vector<1x8x1xf32>
    %22 = math.log %21 : vector<1x8x1xf32>
    %23 = arith.addf %12, %22 : vector<1x8x1xf32>
    %24 = arith.subf %23, %8 : vector<1x8x1xf32>
    %25 = vector.shape_cast %24 : vector<1x8x1xf32> to vector<1x8xf32>
    %c0_14 = arith.constant 0 : index
    %c0_15 = arith.constant 0 : index
    %c0_16 = arith.constant 0 : index
    %26 = vector.load %arg4[%c0_14, %c0_15, %c0_16] : memref<1x1x8xf32, #tpu.memory_space<vmem>>, vector<1x1x8xf32>
    %27 = vector.shape_cast %26 : vector<1x1x8xf32> to vector<1x8xf32>
    %28 = vector.shape_cast %25 : vector<1x8xf32> to vector<1x1x8xf32>
    tpu.vector_store %arg4[%c0_14, %c0_15, %c0_16], %28 {strides = array<i32>} : memref<1x1x8xf32, #tpu.memory_space<vmem>>, vector<1x1x8xf32>,
    return
  }
  func.func @transform_0(%arg0: i32, %arg1: i32) -> (i32, i32, i32) {
    %c0_i32 = arith.constant 0 : i32
    %c0_i32_0 = arith.constant 0 : i32
    return %arg0, %arg1, %c0_i32 : i32, i32, i32
  }
  func.func @transform_1(%arg0: i32, %arg1: i32) -> (i32, i32, i32) {
    %c0_i32 = arith.constant 0 : i32
    %c0_i32_0 = arith.constant 0 : i32
    %c0_i32_1 = arith.constant 0 : i32
    return %arg0, %c0_i32, %c0_i32_0 : i32, i32, i32
  }
  func.func @transform_2(%arg0: i32, %arg1: i32) -> (i32, i32, i32) {
    %c0_i32 = arith.constant 0 : i32
    %c0_i32_0 = arith.constant 0 : i32
    return %arg0, %c0_i32, %arg1 : i32, i32, i32
  }
}

</mosaic_0001>

<llo_original>
// kernel: tpu_custom_call.1
$region0: #{tpu_custom_call.1}
  #allocation0 [shape = 'u32[]', space=smem, size = 0x4, offset = 0x4, fixed_abs, tag = 'smem constant byte address 0x4 - core index']
  #allocation1 [shape = 'u32[144,128]{1,0:T(1,128)}', space=vmem, size = 0x12000, scoped, tag = 'internal scratch']
  %s0 = inlined_call_operand.hbm [shape: f32[2,8,32], index: 0, kind: input, shape index: {}]
  %s1 = inlined_call_operand.hbm [shape: f32[2,8,32], index: 1, kind: input, shape index: {}]
  %s2 = inlined_call_operand.hbm [shape: f32[2,1,8], index: 2, kind: output, shape index: {}]
  %s3 = sld [smem:[#allocation0]]
  $region49: #{tpu_custom_call.1} parent=0
    _
  %s5 = ssub.s32 1, %s3
  %s6 = scalar_select 0, %s5, %s3
  $region1: #{tpu_custom_call.1} parent=0
    #allocation2 [shape = 'u8[8192]{0}', space=vmem, size = 0x2000, scoped, tag = 'input window, operand 0']
    #allocation3 [shape = 's32[2]{0}', space=sflag, size = 0x8, scoped, tag = 'scoped memory for tpu_custom_call.1']
    #allocation4 [shape = 's32[2]{0}', space=sflag, size = 0x8, scoped, tag = 'scoped memory for tpu_custom_call.1']
    #allocation5 [shape = 'u8[8192]{0}', space=vmem, size = 0x2000, scoped, tag = 'input window, operand 1']
    #allocation6 [shape = 's32[2]{0}', space=sflag, size = 0x8, scoped, tag = 'scoped memory for tpu_custom_call.1']
    #allocation7 [shape = 'u8[1024]{0}', space=vmem, size = 0x400, scoped, tag = 'output window, operand 0']
    %7 = vsyncpa [#allocation3], 0
    %s8 = scalar_lea.sflag [#allocation3], 1
    %9 = vsyncpa %s8, 0
    %10 = vsyncpa [#allocation6], 0
    %s11 = scalar_lea.sflag [#allocation6], 1
    %12 = vsyncpa %s11, 0
    %13 = vsyncpa [#allocation4], 0
    %s14 = scalar_lea.sflag [#allocation4], 1
    %15 = vsyncpa %s14, 0
    loop: start=0, step=1, limit=4
    $region2: #{tpu_custom_call.1} parent=1 // loop_pre_header
      _
    $region3: #{tpu_custom_call.1} parent=1 // loop_header
      %s17 = sphi 0, %s21
      %p18 = scmp.ge.s32.totalorder %s17, 4
      %s24 = sphi 0, %s36
      %s25 = sphi 0, %s32
      %s26 = sphi 0, %s24
      %s27 = sphi 0, %s25
      %s28 = sphi 0, %s26
      %s29 = sphi 0, %s27
      %s41 = sphi 0, %s43
      %s44 = sphi 0, %s41
      %s45 = sphi 0, %s44
      %s61 = sphi 0, %s45
      %s67 = sphi 0, %s69
      %s70 = sphi 0, %s67
      %s71 = sphi 0, %s70
      %s87 = sphi 0, %s71
      %s95 = sphi 0, %s97
      %s98 = sphi 0, %s95
      %s99 = sphi 0, %s98
      %s115 = sphi 0, %s99
    $region4: #{tpu_custom_call.1} parent=1 // loop_header_branch
      %20 = sbr.rel (%p18) target = $region8
    $region5: #{tpu_custom_call.1} parent=1 // loop_body
      %s22 = ssub.s32 %s17, 1
      %s23 = ssub.s32 %s17, 2
      %s30 = sadd.s32 1, %s25
      %p31 = scmp.ge.s32.totalorder %s30, 1
      %s32 = scalar_select %p31, 0, %s30
      %s33 = sadd.s32 1, %s24
      %s34 = scalar_select %p31, %s33, %s24
      %p35 = scmp.ge.s32.totalorder %s34, 2
      %s36 = scalar_select %p35, 0, %s34
      %s37 = ssub.s32 %s24, %s36
      %s38 = ssub.s32 %s25, %s32
      %s39 = sor.u32 %s37, %s38
      %p40 = scmp.eq.s32.totalorder %s39, 0
      %s42 = sadd.s32 %s41, 1
      %s43 = scalar_select %p40, %s41, %s42
      %p46 = pneg %p40
      %p47 = scmp.eq.s32.totalorder %s17, 1
      %p48 = por %p46, %p47
      %p49 = scmp.ne.s32.totalorder %s41, %s44
      %p50 = scmp.eq.s32.totalorder %s17, 0
      %p51 = por %p49, %p50
      %p52 = scmp.ne.s32.totalorder %s41, %s44
      %p53 = scmp.eq.s32.totalorder %s22, 1
      %p54 = por %p52, %p53
      %p55 = scmp.ne.s32.totalorder %s44, %s45
      %p56 = scmp.eq.s32.totalorder %s22, 0
      %p57 = por %p55, %p56
      %p58 = scmp.ne.s32.totalorder %s44, %s45
      %p59 = scmp.eq.s32.totalorder %s23, 1
      %p60 = por %p58, %p59
      %p62 = scmp.ne.s32.totalorder %s45, %s61
      %p63 = scmp.eq.s32.totalorder %s23, 0
      %p64 = por %p62, %p63
      %s65 = ssub.s32 %s24, %s36
      %p66 = scmp.eq.s32.totalorder %s65, 0
      %s68 = sadd.s32 %s67, 1
      %s69 = scalar_select %p66, %s67, %s68
      %p72 = pneg %p66
      %p73 = scmp.eq.s32.totalorder %s17, 1
      %p74 = por %p72, %p73
      %p75 = scmp.ne.s32.totalorder %s67, %s70
      %p76 = scmp.eq.s32.totalorder %s17, 0
      %p77 = por %p75, %p76
      %p78 = scmp.ne.s32.totalorder %s67, %s70
      %p79 = scmp.eq.s32.totalorder %s22, 1
      %p80 = por %p78, %p79
      %p81 = scmp.ne.s32.totalorder %s70, %s71
      %p82 = scmp.eq.s32.totalorder %s22, 0
      %p83 = por %p81, %p82
      %p84 = scmp.ne.s32.totalorder %s70, %s71
      %p85 = scmp.eq.s32.totalorder %s23, 1
      %p86 = por %p84, %p85
      %p88 = scmp.ne.s32.totalorder %s71, %s87
      %p89 = scmp.eq.s32.totalorder %s23, 0
      %p90 = por %p88, %p89
      %s91 = ssub.s32 %s24, %s36
      %s92 = ssub.s32 %s25, %s32
      %s93 = sor.u32 %s91, %s92
      %p94 = scmp.eq.s32.totalorder %s93, 0
      %s96 = sadd.s32 %s95, 1
      %s97 = scalar_select %p94, %s95, %s96
      %p100 = pneg %p94
      %p101 = scmp.eq.s32.totalorder %s17, 1
      %p102 = por %p100, %p101
      %p103 = scmp.ne.s32.totalorder %s95, %s98
      %p104 = scmp.eq.s32.totalorder %s17, 0
      %p105 = por %p103, %p104
      %p106 = scmp.ne.s32.totalorder %s95, %s98
      %p107 = scmp.eq.s32.totalorder %s22, 1
      %p108 = por %p106, %p107
      %p109 = scmp.ne.s32.totalorder %s98, %s99
      %p110 = scmp.eq.s32.totalorder %s22, 0
      %p111 = por %p109, %p110
      %p112 = scmp.ne.s32.totalorder %s98, %s99
      %p113 = scmp.eq.s32.totalorder %s23, 1
      %p114 = por %p112, %p113
      %p116 = scmp.ne.s32.totalorder %s99, %s115
      %p117 = scmp.eq.s32.totalorder %s23, 0
      %p118 = por %p116, %p117
      %p119 = scmp.le.s32.totalorder 1, %s17
      %p120 = scmp.lt.s32.totalorder %s17, 3
      %p121 = pnand %p119, %p120
      %p122 = pneg %p121
      // Predicated region
      $region9: #{tpu_custom_call.1} parent=5 // pred_check
        _
      $region10: #{tpu_custom_call.1} parent=5 // pred_check_branch
        %124 = sbr.rel (%p121) target = $region12
      $region11: #{tpu_custom_call.1} parent=5 // pred_region
        %s125 = ssub.s32 %s17, 1
      $region12: #{tpu_custom_call.1} parent=5 // pred_fallthru
        _
      %p126 = scmp.lt.s32.totalorder %s17, 2
      // Predicated region
      $region13: #{tpu_custom_call.1} parent=5 // pred_check
        %p127 = pneg %p126
      $region14: #{tpu_custom_call.1} parent=5 // pred_check_branch
        %129 = sbr.rel (%p127) target = $region16
      $region15: #{tpu_custom_call.1} parent=5 // pred_region
        // Predicated region
        $region17: #{tpu_custom_call.1} parent=15 // pred_check
          %p130 = pneg %p51
        $region18: #{tpu_custom_call.1} parent=15 // pred_check_branch
          %132 = sbr.rel (%p130) target = $region20
        $region19: #{tpu_custom_call.1} parent=15 // pred_region
          %s133 = sand.u32 %s41, 1
          %s134 = scalar_lea.sflag [#allocation3], %s133
          %s135 = sand.u32 %s41, 1
          %s136 = smul.addr %s135, 8
          %s137 = scalar_lea.vmem [#allocation2], %s136
          %s139 = ssub.s32 128, 128
          %140 = vsyncadd %s134, %s139
          %s141 = sadd.s32 %s25, %s24
          %s142 = smul.addr %s141, 128
          %s143 = scalar_lea.hbm %s0, %s142
          %s145 = sshll.u32 %s137, 4
          %s146 = int_to_ptr.vmem [resolvable:$true] %s145
          %148 = dma.hbm_to_vmem [thread:$0]  %s143, 128, %s146, %s134
        $region20: #{tpu_custom_call.1} parent=15 // pred_fallthru
          _
        // Predicated region
        $region21: #{tpu_custom_call.1} parent=15 // pred_check
          %p149 = pneg %p77
        $region22: #{tpu_custom_call.1} parent=15 // pred_check_branch
          %151 = sbr.rel (%p149) target = $region24
        $region23: #{tpu_custom_call.1} parent=15 // pred_region
          %s152 = sand.u32 %s67, 1
          %s153 = scalar_lea.sflag [#allocation6], %s152
          %s154 = sand.u32 %s67, 1
          %s155 = smul.addr %s154, 8
          %s156 = scalar_lea.vmem [#allocation5], %s155
          %s158 = ssub.s32 128, 128
          %159 = vsyncadd %s153, %s158
          %s160 = smul.addr %s24, 128
          %s161 = scalar_lea.hbm %s1, %s160
          %s163 = sshll.u32 %s156, 4
          %s164 = int_to_ptr.vmem [resolvable:$true] %s163
          %166 = dma.hbm_to_vmem [thread:$0]  %s161, 128, %s164, %s153
        $region24: #{tpu_custom_call.1} parent=15 // pred_fallthru
          _
      $region16: #{tpu_custom_call.1} parent=5 // pred_fallthru
        _
      %p167 = scmp.le.s32.totalorder 1, %s17
      %p168 = scmp.lt.s32.totalorder %s17, 3
      %p169 = pnand %p167, %p168
      %p170 = pneg %p169
      // Predicated region
      $region25: #{tpu_custom_call.1} parent=5 // pred_check
        _
      $region26: #{tpu_custom_call.1} parent=5 // pred_check_branch
        %172 = sbr.rel (%p169) target = $region28
      $region27: #{tpu_custom_call.1} parent=5 // pred_region
        %s173 = ssub.s32 %s17, 1
        %s174 = sand.u32 %s44, 1
        %s175 = scalar_lea.sflag [#allocation3], %s174
        %s176 = sand.u32 %s44, 1
        %s177 = smul.addr %s176, 8
        %s178 = scalar_lea.vmem [#allocation2], %s177
        // Predicated region
        $region29: #{tpu_custom_call.1} parent=27 // pred_check
          %p179 = pneg %p57
        $region30: #{tpu_custom_call.1} parent=27 // pred_check_branch
          %181 = sbr.rel (%p179) target = $region32
        $region31: #{tpu_custom_call.1} parent=27 // pred_region
          %182 = dma.done %s175, 128
        $region32: #{tpu_custom_call.1} parent=27 // pred_fallthru
          _
        %s183 = sand.u32 %s70, 1
        %s184 = scalar_lea.sflag [#allocation6], %s183
        %s185 = sand.u32 %s70, 1
        %s186 = smul.addr %s185, 8
        %s187 = scalar_lea.vmem [#allocation5], %s186
        // Predicated region
        $region33: #{tpu_custom_call.1} parent=27 // pred_check
          %p188 = pneg %p83
        $region34: #{tpu_custom_call.1} parent=27 // pred_check_branch
          %190 = sbr.rel (%p188) target = $region36
        $region35: #{tpu_custom_call.1} parent=27 // pred_region
          %191 = dma.done %s184, 128
        $region36: #{tpu_custom_call.1} parent=27 // pred_fallthru
          _
        %s192 = sand.u32 %s44, 1
        %s193 = scalar_lea.sflag [#allocation3], %s192
        %s194 = sand.u32 %s44, 1
        %s195 = smul.addr %s194, 8
        %s196 = scalar_lea.vmem [#allocation2], %s195
        %p197 = pneg %p57
        %p198 = pneg %p54
        %s199 = sand.u32 %s70, 1
        %s200 = scalar_lea.sflag [#allocation6], %s199
        %s201 = sand.u32 %s70, 1
        %s202 = smul.addr %s201, 8
        %s203 = scalar_lea.vmem [#allocation5], %s202
        %p204 = pneg %p83
        %p205 = pneg %p80
        %p206 = pneg %p111
        %p207 = pneg %p108
        %s208 = sand.u32 %s98, 1
        %s209 = scalar_lea.sflag [#allocation4], %s208
        %s210 = sand.u32 %s98, 1
        %s211 = scalar_lea.vmem [#allocation7], %s210
        %v212 = vld [vmem:[%s178] sm:$0xff]
        %v213 = vmul.f32 %v212, 14.285714
        %v214 = vld [vmem:[%s187] sm:$0xff]
        %vm215 = vcmask 261120
        %v217 = vsel %vm215, %v213, 0
        %v220 = vsel %vm215, %v214, 0
        %222 = vmatprep.subr.mxu0 0.0
        %223 = vmatpush1.xpose.msra.mxu0 0.0
        %224 = vmatprep.subr.mxu0 0.0
        %225 = vmatpush1.xpose.msra.mxu0 0.0
        %226 = vmatprep.subr.mxu0 0.0
        %227 = vmatpush1.xpose.msra.mxu0 0.0
        %228 = vmatprep.subr.mxu0 0.0
        %229 = vmatpush1.xpose.msra.mxu0 0.0
        %230 = vmatprep.subr.mxu0 0.0
        %231 = vmatpush1.xpose.msra.mxu0 0.0
        %232 = vmatprep.subr.mxu0 0.0
        %233 = vmatpush1.xpose.msra.mxu0 0.0
        %234 = vmatprep.subr.mxu0 0.0
        %235 = vmatpush1.xpose.msra.mxu0 0.0
        %236 = vmatprep.subr.mxu0 0.0
        %237 = vmatpush1.xpose.msra.mxu0 0.0
        %238 = vmatprep.subr.mxu0 0.0
        %239 = vmatpush1.xpose.msra.mxu0 0.0
        %240 = vmatprep.subr.mxu0 0.0
        %241 = vmatpush1.xpose.msra.mxu0 0.0
        %242 = vmatprep.subr.mxu0 0.0
        %243 = vmatpush1.xpose.msra.mxu0 0.0
        %244 = vmatprep.subr.mxu0 0.0
        %245 = vmatpush1.xpose.msra.mxu0 0.0
        %246 = vmatprep.subr.mxu0 0.0
        %247 = vmatpush1.xpose.msra.mxu0 0.0
        %248 = vmatprep.subr.mxu0 0.0
        %249 = vmatpush1.xpose.msra.mxu0 0.0
        %250 = vmatprep.subr.mxu0 0.0
        %251 = vmatpush1.xpose.msra.mxu0 0.0
        %252 = vmatprep.subr.mxu0 0.0
        %253 = vmatpush1.xpose.msra.mxu0 %v220
        %254 = vmatprep.subr.mxu0 0.0
        %255 = vmatpush2.xpose.msra.mxu0 0.0
        %256 = vmatprep.subr.mxu0 0.0
        %257 = vmatpush2.xpose.msra.mxu0 0.0
        %258 = vmatprep.subr.mxu0 0.0
        %259 = vmatpush2.xpose.msra.mxu0 0.0
        %260 = vmatprep.subr.mxu0 0.0
        %261 = vmatpush2.xpose.msra.mxu0 0.0
        %262 = vmatprep.subr.mxu0 0.0
        %263 = vmatpush2.xpose.msra.mxu0 0.0
        %264 = vmatprep.subr.mxu0 0.0
        %265 = vmatpush2.xpose.msra.mxu0 0.0
        %266 = vmatprep.subr.mxu0 0.0
        %267 = vmatpush2.xpose.msra.mxu0 0.0
        %268 = vmatprep.subr.mxu0 0.0
        %269 = vmatpush2.xpose.msra.mxu0 0.0
        %270 = vmatprep.subr.mxu0 0.0
        %271 = vmatpush2.xpose.msra.mxu0 0.0
        %272 = vmatprep.subr.mxu0 0.0
        %273 = vmatpush2.xpose.msra.mxu0 0.0
        %274 = vmatprep.subr.mxu0 0.0
        %275 = vmatpush2.xpose.msra.mxu0 0.0
        %276 = vmatprep.subr.mxu0 0.0
        %277 = vmatpush2.xpose.msra.mxu0 0.0
        %278 = vmatprep.subr.mxu0 0.0
        %279 = vmatpush2.xpose.msra.mxu0 0.0
        %280 = vmatprep.subr.mxu0 0.0
        %281 = vmatpush2.xpose.msra.mxu0 0.0
        %282 = vmatprep.subr.mxu0 0.0
        %283 = vmatpush2.xpose.msra.mxu0 0.0
        %284 = vmatprep.subr.mxu0 0.0
        %285 = vmatpush2.xpose.msra.mxu0 0.0
        %286 = vmatprep.mubr.f32.mxu0 0.0
        %287 = vmatmul.mubr.f32.gmra.mxu0 %v217
        %v288 = vpop.f32.mrf.mxu0
        %v289 = vadd.f32 0.0, %v288
        %v290 = vpop.f32.mrf.mxu0
        %291 = vdwg.mxu0
        %v292 = vmul.f32 %v213, %v214
        %v293 = vsel %vm215, %v292, 0.0
        %294 = vadd.xlane.f32.xlu0 %v293
        %v295 = vpop.xlane.xlu0 %294
        %vm296 = vcmask 64512
        %v297 = vsel %vm296, %v289, -inf
        %298 = vmax.xlane.f32.xlu0 %v297
        %v299 = vpop.xlane.xlu0 %298
        %v300 = vmax.f32 %v299, -142.85715
        %v301 = vsub.f32 %v289, %v300
        %v302 = vmul.f32 %v301, 1.442695
        %v303 = vpow.pop %v302
        %v304 = vsel %vm296, %v303, 0.0
        %305 = vadd.xlane.f32.xlu0 %v304
        %v306 = vpop.xlane.xlu0 %305
        %v307 = vsub.f32 -142.85715, %v300
        %v308 = vmul.f32 %v307, 1.442695
        %v309 = vpow.pop %v308
        %v310 = vadd.f32 %v306, %v309
        %v311 = vlog2.pop %v310
        %v312 = vmul.f32 %v311, 0.6931472
        %v313 = vadd.f32 %v300, %v312
        %v314 = vsub.f32 %v313, %v295
        %v316 = vlaneseq
        %v317 = vand.u32 %v316, 127
        %v318 = vlaneseq
        %v319 = vshrl.u32 %v318, 7
        %v320 = vsub.s32 %v317, %v319
        %v321 = vrot.slane %v314, %v320
        %vm323 = vcmask 57344
        %324 = vst.msk [vmem:[%s211] sm:$0x1] %vm323, %v321
        %s325 = sand.u32 %s98, 1
        %s326 = scalar_lea.sflag [#allocation4], %s325
        %s327 = sand.u32 %s98, 1
        %s328 = scalar_lea.vmem [#allocation7], %s327
        // Predicated region
        $region37: #{tpu_custom_call.1} parent=27 // pred_check
          %p329 = pneg %p108
        $region38: #{tpu_custom_call.1} parent=27 // pred_check_branch
          %331 = sbr.rel (%p329) target = $region40
        $region39: #{tpu_custom_call.1} parent=27 // pred_region
          %s333 = ssub.s32 16, 16
          %334 = vsyncadd %s326, %s333
          %s335 = sadd.s32 %s27, %s26
          %s336 = smul.addr %s335, 16
          %s337 = scalar_lea.hbm %s2, %s336
          %s339 = sshll.u32 %s328, 4
          %s340 = int_to_ptr.vmem [resolvable:$true] %s339
          %342 = dma.vmem_to_hbm [thread:$0]  %s340, 16, %s337, %s326
        $region40: #{tpu_custom_call.1} parent=27 // pred_fallthru
          _
      $region28: #{tpu_custom_call.1} parent=5 // pred_fallthru
        _
      %p343 = scmp.le.s32.totalorder 2, %s17
      // Predicated region
      $region41: #{tpu_custom_call.1} parent=5 // pred_check
        %p344 = pneg %p343
      $region42: #{tpu_custom_call.1} parent=5 // pred_check_branch
        %346 = sbr.rel (%p344) target = $region44
      $region43: #{tpu_custom_call.1} parent=5 // pred_region
        %s347 = ssub.s32 %s17, 2
        // Predicated region
        $region45: #{tpu_custom_call.1} parent=43 // pred_check
          %p348 = pneg %p114
        $region46: #{tpu_custom_call.1} parent=43 // pred_check_branch
          %350 = sbr.rel (%p348) target = $region48
        $region47: #{tpu_custom_call.1} parent=43 // pred_region
          %s351 = sand.u32 %s99, 1
          %s352 = scalar_lea.sflag [#allocation4], %s351
          %s353 = sand.u32 %s99, 1
          %s354 = scalar_lea.vmem [#allocation7], %s353
          %355 = dma.done %s352, 16
        $region48: #{tpu_custom_call.1} parent=43 // pred_fallthru
          _
      $region44: #{tpu_custom_call.1} parent=5 // pred_fallthru
        _
    $region6: #{tpu_custom_call.1} parent=1 // loop_footer
      %s21 = sadd.s32 1, %s17
    $region7: #{tpu_custom_call.1} parent=1 // loop_footer_branch
      %16 = sbr.rel target = $region3
    $region8: #{tpu_custom_call.1} parent=1 // loop_exit
      _
    %356 = vsyncpa [#allocation3], 1
    %s357 = scalar_lea.sflag [#allocation3], 1
    %358 = vsyncpa %s357, 1
    %359 = vsyncpa [#allocation6], 1
    %s360 = scalar_lea.sflag [#allocation6], 1
    %361 = vsyncpa %s360, 1
    %362 = vsyncpa [#allocation4], 1
    %s363 = scalar_lea.sflag [#allocation4], 1
    %364 = vsyncpa %s363, 1

</llo_original>
